<compile_context>
chip_gen: v7x
topology: tpu7x:2x2x1
jax: 0.10.0
libtpu: 0.0.40
codegen_flags: <defaults>
</compile_context>

<pallas_src>
import jax
import jax.numpy as jnp
from jax.experimental import pallas as pl
from jax.experimental.pallas import tpu as pltpu

# ---- small, module-consistent shapes ---------------------------------------
B = 2          # samples (labels)
C = 8          # max contexts per sample (ragged counts, masked in-kernel)
P = 4          # nodes per path
E = 32         # embedding size
H = 64         # classifier_input_size (context vector size)
NC = 2         # num_classes
F = 3 * E      # concat feature size (96)
F_PAD = 128    # feature axis zero-padded to a full lane width / aligned MXU K
O_PAD = 128    # classifier output zero-padded for a lane-dense store
N_TOKENS, N_NODES = 50, 20
TOKEN_PAD, NODE_PAD = 0, 0
TOK_ROWS = 64          # token table rows padded to a sublane multiple
NODE_ROWS = 32         # node table rows padded
G_ROWS = TOK_ROWS + NODE_ROWS + TOK_ROWS   # 160: [from | path | to] blocks
BC = B * C


# ---- fused kernel: gather + encoder + attention + classifier ---------------
def _code2vec_attn_kernel(from_ref, to_ref, nodes_ref, counts_ref,
                          gtab_ref, w_enc_ref, a_ref, w_cls_ref, b_cls_ref,
                          out_ref):
    # --- fused embedding gather: one-hot / multi-hot rows built from VMEM
    #     index arrays (vectorized compares, no SMEM scalar loop), then ONE
    #     bf16 MXU matmul against the block-diagonal table gives the
    #     lane-dense [BC, 128] feature block = [from | sum(path) | to | 0].
    g_iota = jax.lax.broadcasted_iota(jnp.int32, (BC, G_ROWS), 1)
    g = (g_iota == from_ref[...]).astype(jnp.float32)                   # from
    g = g + (g_iota == (to_ref[...] + TOK_ROWS + NODE_ROWS)).astype(jnp.float32)
    nodes = nodes_ref[...]                                              # [BC,P]
    for p in range(P):                                                  # static
        g = g + (g_iota == (nodes[:, p:p + 1] + TOK_ROWS)).astype(jnp.float32)
    x = jnp.dot(g.astype(jnp.bfloat16), gtab_ref[...],
                preferred_element_type=jnp.float32)                     # [BC,128]

    # --- PathEncoder hot path: Linear(3E->H, no bias) + tanh (bf16 MXU) ----
    ctx = jnp.tanh(jnp.dot(x.astype(jnp.bfloat16), w_enc_ref[...],
                           preferred_element_type=jnp.float32))         # [BC,H]
    ctx3 = ctx.reshape(B, C, H)                                         # [B,C,H]

    # --- attention scores, lane-major [B, C]; ragged mask from [B,1] counts
    scores = jnp.sum(ctx3 * a_ref[...].reshape(1, 1, H), axis=-1)       # [B,C]
    col = jax.lax.broadcasted_iota(jnp.int32, (B, C), 1)
    scores = jnp.where(col < counts_ref[...], scores, -1e30)

    # --- per-sample softmax; divide routed through the EUP (approx recip) --
    m = jnp.max(scores, axis=-1, keepdims=True)                         # [B,1]
    e = jnp.exp(scores - m)
    attn = e * pl.reciprocal(jnp.sum(e, axis=-1, keepdims=True), approx=True)

    # --- code_vector: VPU weighted sum (no tiny MXU dots, no concat) -------
    code = jnp.sum(attn[:, :, None] * ctx3, axis=1)                     # [B,H]

    # --- classifier: bf16 MXU matmul, f32 accumulate + f32 bias, lane-dense
    logits = jnp.dot(code.astype(jnp.bfloat16), w_cls_ref[...],
                     preferred_element_type=jnp.float32) + b_cls_ref[...]
    out_ref[...] = logits                                               # [B,128]


def code2vec_attn_pallas(from_idx, to_idx, nodes_idx, counts,
                         gtab, w_enc_pad, a_vec, w_cls_pad, b_cls_pad):
    # Single step, no grid: every operand is tiny and lives fully in VMEM
    # (whole-array default specs), so there is no pipeline / double-buffer
    # bookkeeping at all.
    out = pl.pallas_call(
        _code2vec_attn_kernel,
        out_shape=jax.ShapeDtypeStruct((B, O_PAD), jnp.float32),
    )(from_idx, to_idx, nodes_idx, counts,
      gtab, w_enc_pad, a_vec, w_cls_pad, b_cls_pad)
    return out[:, :NC]                                                  # [B,NC]


# ---- pure-JAX reference (module semantics, bf16-rounded params) ------------
def code2vec_attn_reference(from_tok, to_tok, path_nodes, counts,
                            token_emb, node_emb, w_enc, a_vec, w_cls, b_cls):
    f = token_emb[from_tok]                              # [B,C,E]
    t = token_emb[to_tok]                                # [B,C,E]
    p = node_emb[path_nodes].sum(axis=2)                 # [B,C,E] (pad nodes=0)
    xcat = jnp.concatenate([f, p, t], axis=-1)           # [B,C,3E]
    ctx = jnp.tanh(jnp.einsum('bcf,fh->bch', xcat, w_enc))
    scores = jnp.einsum('bch,h->bc', ctx, a_vec[0])
    valid = jnp.arange(C)[None, :] < counts[:, None]
    scores = jnp.where(valid, scores, -1e30)
    attn = jax.nn.softmax(scores, axis=-1)
    code = jnp.einsum('bc,bch->bh', attn, ctx)
    return code @ w_cls + b_cls                          # [B,NC]


if __name__ == "__main__":
    key = jax.random.PRNGKey(0)
    ks = jax.random.split(key, 10)

    # ---- deterministic parameters (shapes from the module __init__) -------
    token_emb = 0.1 * jax.random.normal(ks[0], (N_TOKENS, E), jnp.float32)
    token_emb = token_emb.at[TOKEN_PAD].set(0.0)         # padding_idx -> zeros
    node_emb = 0.1 * jax.random.normal(ks[1], (N_NODES, E), jnp.float32)
    node_emb = node_emb.at[NODE_PAD].set(0.0)
    w_enc = 0.1 * jax.random.normal(ks[2], (F, H), jnp.float32)
    a_vec = 0.1 * jax.random.normal(ks[3], (1, H), jnp.float32)
    w_cls = 0.1 * jax.random.normal(ks[4], (H, NC), jnp.float32)
    b_cls = 0.01 * jax.random.normal(ks[5], (1, NC), jnp.float32)

    # ---- deterministic synthetic "samples" ---------------------------------
    from_tok = jax.random.randint(ks[6], (B, C), 1, N_TOKENS)
    to_tok = jax.random.randint(ks[7], (B, C), 1, N_TOKENS)
    path_nodes = jax.random.randint(ks[8], (B, C, P), 1, N_NODES)
    paths_for_label = jnp.array([C, 5], dtype=jnp.int32)  # ragged counts (>=1)

    # ---- one-time host-side packing for the kernel --------------------------
    # Block-diagonal gather table [160, 128] (bf16):
    #   rows [0:64)    x cols [0:32)  -> token table   (from-token block)
    #   rows [64:96)   x cols [32:64) -> node table    (path-nodes block)
    #   rows [96:160)  x cols [64:96) -> token table   (to-token block)
    token_bf = token_emb.astype(jnp.bfloat16)
    node_bf = node_emb.astype(jnp.bfloat16)
    gtab = jnp.zeros((G_ROWS, F_PAD), jnp.float32)
    gtab = gtab.at[:N_TOKENS, 0:E].set(token_bf.astype(jnp.float32))
    gtab = gtab.at[TOK_ROWS:TOK_ROWS + N_NODES, E:2 * E].set(
        node_bf.astype(jnp.float32))
    gtab = gtab.at[TOK_ROWS + NODE_ROWS:TOK_ROWS + NODE_ROWS + N_TOKENS,
                   2 * E:3 * E].set(token_bf.astype(jnp.float32))
    gtab = gtab.astype(jnp.bfloat16)

    w_enc_bf = w_enc.astype(jnp.bfloat16)
    w_enc_pad = jnp.zeros((F_PAD, H), jnp.bfloat16).at[:F, :].set(w_enc_bf)
    w_cls_bf = w_cls.astype(jnp.bfloat16)
    w_cls_pad = jnp.zeros((H, O_PAD), jnp.bfloat16).at[:, :NC].set(w_cls_bf)
    b_cls_pad = jnp.zeros((1, O_PAD), jnp.float32).at[:, :NC].set(b_cls)

    from_idx = from_tok.reshape(BC, 1).astype(jnp.int32)
    to_idx = to_tok.reshape(BC, 1).astype(jnp.int32)
    nodes_idx = path_nodes.reshape(BC, P).astype(jnp.int32)
    counts2 = paths_for_label.reshape(B, 1)

    # ---- run kernel + verify -------------------------------------------------
    out = code2vec_attn_pallas(from_idx, to_idx, nodes_idx, counts2,
                               gtab, w_enc_pad, a_vec, w_cls_pad, b_cls_pad)
    out = jax.block_until_ready(out)

    ref = code2vec_attn_reference(
        from_tok, to_tok, path_nodes, paths_for_label,
        token_bf.astype(jnp.float32), node_bf.astype(jnp.float32),
        w_enc_bf.astype(jnp.float32), a_vec,
        w_cls_bf.astype(jnp.float32), b_cls)

    assert out.shape == (B, NC)
    assert jnp.allclose(out, ref, rtol=2e-2, atol=2e-2), (out, ref)
    print("KERNEL_OK")
</pallas_src>

<mosaic_0001>
module attributes {stable_mosaic.version = 11 : i64} {
  func.func @_code2vec_attn_kernel(%arg0: memref<16x1xi32, #tpu.memory_space<vmem>>, %arg1: memref<16x1xi32, #tpu.memory_space<vmem>>, %arg2: memref<16x4xi32, #tpu.memory_space<vmem>>, %arg3: memref<2x1xi32, #tpu.memory_space<vmem>>, %arg4: memref<160x128xbf16, #tpu.memory_space<vmem>>, %arg5: memref<128x64xbf16, #tpu.memory_space<vmem>>, %arg6: memref<1x64xf32, #tpu.memory_space<vmem>>, %arg7: memref<64x128xbf16, #tpu.memory_space<vmem>>, %arg8: memref<1x128xf32, #tpu.memory_space<vmem>>, %arg9: memref<2x128xf32, #tpu.memory_space<vmem>>) attributes {dimension_semantics = [], scalar_prefetch = 0 : i64, scratch_operands = 0 : i64, tpu.core_type = #tpu.core_type<tc>} {
    %0 = tpu.iota {dimensions = array<i32: 1>} : vector<16x160xi32>
    %c0 = arith.constant 0 : index
    %c0_0 = arith.constant 0 : index
    %1 = vector.load %arg0[%c0, %c0_0] : memref<16x1xi32, #tpu.memory_space<vmem>>, vector<16x1xi32>
    %2 = vector.broadcast %1 : vector<16x1xi32> to vector<16x160xi32>
    %3 = arith.cmpi eq, %0, %2 : vector<16x160xi32>
    %4 = arith.extui %3 : vector<16x160xi1> to vector<16x160xi32>
    %5 = arith.sitofp %4 : vector<16x160xi32> to vector<16x160xf32>
    %c0_1 = arith.constant 0 : index
    %c0_2 = arith.constant 0 : index
    %6 = vector.load %arg1[%c0_1, %c0_2] : memref<16x1xi32, #tpu.memory_space<vmem>>, vector<16x1xi32>
    %c64_i32 = arith.constant 64 : i32
    %7 = vector.broadcast %c64_i32 : i32 to vector<16x1xi32>
    %8 = arith.addi %6, %7 : vector<16x1xi32>
    %c32_i32 = arith.constant 32 : i32
    %9 = vector.broadcast %c32_i32 : i32 to vector<16x1xi32>
    %10 = arith.addi %8, %9 : vector<16x1xi32>
    %11 = vector.broadcast %10 : vector<16x1xi32> to vector<16x160xi32>
    %12 = arith.cmpi eq, %0, %11 : vector<16x160xi32>
    %13 = arith.extui %12 : vector<16x160xi1> to vector<16x160xi32>
    %14 = arith.sitofp %13 : vector<16x160xi32> to vector<16x160xf32>
    %15 = arith.addf %5, %14 : vector<16x160xf32>
    %c0_3 = arith.constant 0 : index
    %c0_4 = arith.constant 0 : index
    %16 = vector.load %arg2[%c0_3, %c0_4] : memref<16x4xi32, #tpu.memory_space<vmem>>, vector<16x4xi32>
    %17 = vector.extract_strided_slice %16 {offsets = [0, 0], sizes = [16, 1], strides = [1, 1]} : vector<16x4xi32> to vector<16x1xi32>
    %c64_i32_5 = arith.constant 64 : i32
    %18 = vector.broadcast %c64_i32_5 : i32 to vector<16x1xi32>
    %19 = arith.addi %17, %18 : vector<16x1xi32>
    %20 = vector.broadcast %19 : vector<16x1xi32> to vector<16x160xi32>
    %21 = arith.cmpi eq, %0, %20 : vector<16x160xi32>
    %22 = arith.extui %21 : vector<16x160xi1> to vector<16x160xi32>
    %23 = arith.sitofp %22 : vector<16x160xi32> to vector<16x160xf32>
    %24 = arith.addf %15, %23 : vector<16x160xf32>
    %25 = vector.extract_strided_slice %16 {offsets = [0, 1], sizes = [16, 1], strides = [1, 1]} : vector<16x4xi32> to vector<16x1xi32>
    %c64_i32_6 = arith.constant 64 : i32
    %26 = vector.broadcast %c64_i32_6 : i32 to vector<16x1xi32>
    %27 = arith.addi %25, %26 : vector<16x1xi32>
    %28 = vector.broadcast %27 : vector<16x1xi32> to vector<16x160xi32>
    %29 = arith.cmpi eq, %0, %28 : vector<16x160xi32>
    %30 = arith.extui %29 : vector<16x160xi1> to vector<16x160xi32>
    %31 = arith.sitofp %30 : vector<16x160xi32> to vector<16x160xf32>
    %32 = arith.addf %24, %31 : vector<16x160xf32>
    %33 = vector.extract_strided_slice %16 {offsets = [0, 2], sizes = [16, 1], strides = [1, 1]} : vector<16x4xi32> to vector<16x1xi32>
    %c64_i32_7 = arith.constant 64 : i32
    %34 = vector.broadcast %c64_i32_7 : i32 to vector<16x1xi32>
    %35 = arith.addi %33, %34 : vector<16x1xi32>
    %36 = vector.broadcast %35 : vector<16x1xi32> to vector<16x160xi32>
    %37 = arith.cmpi eq, %0, %36 : vector<16x160xi32>
    %38 = arith.extui %37 : vector<16x160xi1> to vector<16x160xi32>
    %39 = arith.sitofp %38 : vector<16x160xi32> to vector<16x160xf32>
    %40 = arith.addf %32, %39 : vector<16x160xf32>
    %41 = vector.extract_strided_slice %16 {offsets = [0, 3], sizes = [16, 1], strides = [1, 1]} : vector<16x4xi32> to vector<16x1xi32>
    %c64_i32_8 = arith.constant 64 : i32
    %42 = vector.broadcast %c64_i32_8 : i32 to vector<16x1xi32>
    %43 = arith.addi %41, %42 : vector<16x1xi32>
    %44 = vector.broadcast %43 : vector<16x1xi32> to vector<16x160xi32>
    %45 = arith.cmpi eq, %0, %44 : vector<16x160xi32>
    %46 = arith.extui %45 : vector<16x160xi1> to vector<16x160xi32>
    %47 = arith.sitofp %46 : vector<16x160xi32> to vector<16x160xf32>
    %48 = arith.addf %40, %47 : vector<16x160xf32>
    %49 = arith.truncf %48 : vector<16x160xf32> to vector<16x160xbf16>
    %c0_9 = arith.constant 0 : index
    %c0_10 = arith.constant 0 : index
    %50 = vector.load %arg4[%c0_9, %c0_10] : memref<160x128xbf16, #tpu.memory_space<vmem>>, vector<160x128xbf16>
    %cst = arith.constant dense<0.000000e+00> : vector<16x128xf32>
    %51 = tpu.matmul %49, %50, %cst {dimension_numbers = #tpu.dot_dimension_numbers<[1], [0], [0], [1], [0, 0, 1, 1], [], []>} : vector<16x160xbf16>, vector<160x128xbf16>, vector<16x128xf32> -> vector<16x128xf32>
    %52 = arith.truncf %51 : vector<16x128xf32> to vector<16x128xbf16>
    %c0_11 = arith.constant 0 : index
    %c0_12 = arith.constant 0 : index
    %53 = vector.load %arg5[%c0_11, %c0_12] : memref<128x64xbf16, #tpu.memory_space<vmem>>, vector<128x64xbf16>
    %cst_13 = arith.constant dense<0.000000e+00> : vector<16x64xf32>
    %54 = tpu.matmul %52, %53, %cst_13 {dimension_numbers = #tpu.dot_dimension_numbers<[1], [0], [0], [1], [0, 0, 1, 1], [], []>} : vector<16x128xbf16>, vector<128x64xbf16>, vector<16x64xf32> -> vector<16x64xf32>
    %55 = math.tanh %54 : vector<16x64xf32>
    %56 = vector.shape_cast %55 : vector<16x64xf32> to vector<2x8x64xf32>
    %c0_14 = arith.constant 0 : index
    %c0_15 = arith.constant 0 : index
    %57 = vector.load %arg6[%c0_14, %c0_15] : memref<1x64xf32, #tpu.memory_space<vmem>>, vector<1x64xf32>
    %58 = vector.shape_cast %57 : vector<1x64xf32> to vector<1x1x64xf32>
    %59 = vector.broadcast %58 : vector<1x1x64xf32> to vector<2x8x64xf32>
    %60 = arith.mulf %56, %59 : vector<2x8x64xf32>
    %cst_16 = arith.constant dense<0.000000e+00> : vector<2x8xf32>
    %61 = vector.multi_reduction <add>, %60, %cst_16 [2] : vector<2x8x64xf32> to vector<2x8xf32>
    %62 = tpu.iota {dimensions = array<i32: 1>} : vector<2x8xi32>
    %c0_17 = arith.constant 0 : index
    %c0_18 = arith.constant 0 : index
    %63 = vector.load %arg3[%c0_17, %c0_18] : memref<2x1xi32, #tpu.memory_space<vmem>>, vector<2x1xi32>
    %64 = vector.broadcast %63 : vector<2x1xi32> to vector<2x8xi32>
    %65 = arith.cmpi slt, %62, %64 : vector<2x8xi32>
    %cst_19 = arith.constant -1.000000e+30 : f32
    %66 = vector.broadcast %cst_19 : f32 to vector<2x8xf32>
    %67 = arith.select %65, %61, %66 : vector<2x8xi1>, vector<2x8xf32>
    %cst_20 = arith.constant dense<0xFF800000> : vector<2xf32>
    %68 = vector.multi_reduction <maximumf>, %67, %cst_20 [1] : vector<2x8xf32> to vector<2xf32>
    %69 = vector.shape_cast %68 : vector<2xf32> to vector<2x1xf32>
    %70 = vector.broadcast %69 : vector<2x1xf32> to vector<2x8xf32>
    %71 = arith.subf %67, %70 : vector<2x8xf32>
    %72 = math.exp %71 : vector<2x8xf32>
    %cst_21 = arith.constant dense<0.000000e+00> : vector<2xf32>
    %73 = vector.multi_reduction <add>, %72, %cst_21 [1] : vector<2x8xf32> to vector<2xf32>
    %74 = vector.shape_cast %73 : vector<2xf32> to vector<2x1xf32>
    %75 = tpu.reciprocal %74 {approx = true} : vector<2x1xf32> -> vector<2x1xf32>
    %76 = vector.broadcast %75 : vector<2x1xf32> to vector<2x8xf32>
    %77 = arith.mulf %72, %76 : vector<2x8xf32>
    %78 = vector.shape_cast %77 : vector<2x8xf32> to vector<2x8x1xf32>
    %79 = vector.broadcast %78 : vector<2x8x1xf32> to vector<2x8x64xf32>
    %80 = arith.mulf %79, %56 : vector<2x8x64xf32>
    %cst_22 = arith.constant dense<0.000000e+00> : vector<2x64xf32>
    %81 = vector.multi_reduction <add>, %80, %cst_22 [1] : vector<2x8x64xf32> to vector<2x64xf32>
    %82 = arith.truncf %81 : vector<2x64xf32> to vector<2x64xbf16>
    %c0_23 = arith.constant 0 : index
    %c0_24 = arith.constant 0 : index
    %83 = vector.load %arg7[%c0_23, %c0_24] : memref<64x128xbf16, #tpu.memory_space<vmem>>, vector<64x128xbf16>
    %cst_25 = arith.constant dense<0.000000e+00> : vector<2x128xf32>
    %84 = tpu.matmul %82, %83, %cst_25 {dimension_numbers = #tpu.dot_dimension_numbers<[1], [0], [0], [1], [0, 0, 1, 1], [], []>} : vector<2x64xbf16>, vector<64x128xbf16>, vector<2x128xf32> -> vector<2x128xf32>
    %c0_26 = arith.constant 0 : index
    %c0_27 = arith.constant 0 : index
    %85 = vector.load %arg8[%c0_26, %c0_27] : memref<1x128xf32, #tpu.memory_space<vmem>>, vector<1x128xf32>
    %86 = vector.broadcast %85 : vector<1x128xf32> to vector<2x128xf32>
    %87 = arith.addf %84, %86 : vector<2x128xf32>
    %c0_28 = arith.constant 0 : index
    %c0_29 = arith.constant 0 : index
    %88 = vector.load %arg9[%c0_28, %c0_29] : memref<2x128xf32, #tpu.memory_space<vmem>>, vector<2x128xf32>
    tpu.vector_store %arg9[%c0_28, %c0_29], %87 {strides = array<i32>} : memref<2x128xf32, #tpu.memory_space<vmem>>, vector<2x128xf32>,
    return
  }
}

</mosaic_0001>

<llo_original>
// kernel: tpu_custom_call.1
$region0: #{tpu_custom_call.1}
  #allocation0 [shape = 'u32[]', space=smem, size = 0x4, offset = 0x4, fixed_abs, tag = 'smem constant byte address 0x4 - core index']
  #allocation1 [shape = 'u32[144,128]{1,0:T(1,128)}', space=vmem, size = 0x12000, scoped, tag = 'internal scratch']
  %s0 = inlined_call_operand.vmem [shape: s32[16,1], index: 0, kind: input, shape index: {}]
  %s1 = inlined_call_operand.vmem [shape: s32[16,1], index: 1, kind: input, shape index: {}]
  %s2 = inlined_call_operand.vmem [shape: s32[16,4], index: 2, kind: input, shape index: {}]
  %s3 = inlined_call_operand.vmem [shape: s32[2,1], index: 3, kind: input, shape index: {}]
  %s4 = inlined_call_operand.vmem [shape: bf16[160,128], index: 4, kind: input, shape index: {}]
  %s5 = inlined_call_operand.vmem [shape: bf16[128,64], index: 5, kind: input, shape index: {}]
  %s6 = inlined_call_operand.vmem [shape: f32[1,64], index: 6, kind: input, shape index: {}]
  %s7 = inlined_call_operand.vmem [shape: bf16[64,128], index: 7, kind: input, shape index: {}]
  %s8 = inlined_call_operand.vmem [shape: f32[1,128], index: 8, kind: input, shape index: {}]
  %s9 = inlined_call_operand.hbm [shape: f32[2,128], index: 9, kind: output, shape index: {}]
  %s10 = sld [smem:[#allocation0]]
  $region46: #{tpu_custom_call.1} parent=0
    _
  %s12 = ssub.s32 1, %s10
  %s13 = scalar_select 0, %s12, %s10
  $region1: #{tpu_custom_call.1} parent=0
    #allocation2 [shape = 'u8[1024]{0}', space=vmem, size = 0x400, scoped, tag = 'output window, operand 0, single buffered']
    #allocation3 [shape = 's32[1]{0}', space=sflag, size = 0x4, scoped, tag = 'scoped memory for tpu_custom_call.1']
    %14 = vsyncpa [#allocation3], 0
    // Predicated region
    $region2: #{tpu_custom_call.1} parent=1 // pred_check
      _
    $region3: #{tpu_custom_call.1} parent=1 // pred_check_branch
      %16 = sbr.rel (0) target = $region5
    $region4: #{tpu_custom_call.1} parent=1 // pred_region
      _
    $region5: #{tpu_custom_call.1} parent=1 // pred_fallthru
      _
    // Predicated region
    $region6: #{tpu_custom_call.1} parent=1 // pred_check
      _
    $region7: #{tpu_custom_call.1} parent=1 // pred_check_branch
      %18 = sbr.rel (0) target = $region9
    $region8: #{tpu_custom_call.1} parent=1 // pred_region
      _
    $region9: #{tpu_custom_call.1} parent=1 // pred_fallthru
      _
    // Predicated region
    $region10: #{tpu_custom_call.1} parent=1 // pred_check
      _
    $region11: #{tpu_custom_call.1} parent=1 // pred_check_branch
      %20 = sbr.rel (0) target = $region13
    $region12: #{tpu_custom_call.1} parent=1 // pred_region
      _
    $region13: #{tpu_custom_call.1} parent=1 // pred_fallthru
      _
    // Predicated region
    $region14: #{tpu_custom_call.1} parent=1 // pred_check
      _
    $region15: #{tpu_custom_call.1} parent=1 // pred_check_branch
      %22 = sbr.rel (0) target = $region17
    $region16: #{tpu_custom_call.1} parent=1 // pred_region
      _
    $region17: #{tpu_custom_call.1} parent=1 // pred_fallthru
      _
    // Predicated region
    $region18: #{tpu_custom_call.1} parent=1 // pred_check
      _
    $region19: #{tpu_custom_call.1} parent=1 // pred_check_branch
      %24 = sbr.rel (0) target = $region21
    $region20: #{tpu_custom_call.1} parent=1 // pred_region
      _
    $region21: #{tpu_custom_call.1} parent=1 // pred_fallthru
      _
    // Predicated region
    $region22: #{tpu_custom_call.1} parent=1 // pred_check
      _
    $region23: #{tpu_custom_call.1} parent=1 // pred_check_branch
      %26 = sbr.rel (0) target = $region25
    $region24: #{tpu_custom_call.1} parent=1 // pred_region
      _
    $region25: #{tpu_custom_call.1} parent=1 // pred_fallthru
      _
    // Predicated region
    $region26: #{tpu_custom_call.1} parent=1 // pred_check
      _
    $region27: #{tpu_custom_call.1} parent=1 // pred_check_branch
      %28 = sbr.rel (0) target = $region29
    $region28: #{tpu_custom_call.1} parent=1 // pred_region
      _
    $region29: #{tpu_custom_call.1} parent=1 // pred_fallthru
      _
    // Predicated region
    $region30: #{tpu_custom_call.1} parent=1 // pred_check
      _
    $region31: #{tpu_custom_call.1} parent=1 // pred_check_branch
      %30 = sbr.rel (0) target = $region33
    $region32: #{tpu_custom_call.1} parent=1 // pred_region
      _
    $region33: #{tpu_custom_call.1} parent=1 // pred_fallthru
      _
    // Predicated region
    $region34: #{tpu_custom_call.1} parent=1 // pred_check
      _
    $region35: #{tpu_custom_call.1} parent=1 // pred_check_branch
      %32 = sbr.rel (0) target = $region37
    $region36: #{tpu_custom_call.1} parent=1 // pred_region
      _
    $region37: #{tpu_custom_call.1} parent=1 // pred_fallthru
      _
    %v34 = vlaneseq
    %v35 = vand.u32 %v34, 127
    %v36 = vadd.s32 %v35, 128
    %v37 = vld [vmem:[%s0] sm:$0xff]
    %v38 = vld [vmem:[%s0 + $0x8] sm:$0xff]
    %39 = vset.pattern.permute.xlu0 0
    %40 = vperm.xlu0 %39, %v37
    %v41 = vpop.permute.xlu0 %40
    %42 = vset.pattern.permute.xlu0 0
    %43 = vperm.xlu0 %42, %v38
    %v44 = vpop.permute.xlu0 %43
    %vm45 = vcmp.eq.s32.totalorder %v35, %v41
    %vm46 = vcmp.eq.s32.totalorder %v36, %v41
    %vm47 = vcmp.eq.s32.totalorder %v35, %v44
    %vm48 = vcmp.eq.s32.totalorder %v36, %v44
    %v49 = vsel %vm45, 1, 0
    %v50 = vsel %vm46, 1, 0
    %v51 = vsel %vm47, 1, 0
    %v52 = vsel %vm48, 1, 0
    %v53 = vcvt.s32.f32 %v49
    %v54 = vcvt.s32.f32 %v50
    %v55 = vcvt.s32.f32 %v51
    %v56 = vcvt.s32.f32 %v52
    %v57 = vld [vmem:[%s1] sm:$0xff]
    %v58 = vld [vmem:[%s1 + $0x8] sm:$0xff]
    %v59 = vadd.s32 %v57, 64
    %v60 = vadd.s32 %v58, 64
    %v61 = vadd.s32 %v59, 32
    %v62 = vadd.s32 %v60, 32
    %63 = vset.pattern.permute.xlu0 0
    %64 = vperm.xlu0 %63, %v61
    %v65 = vpop.permute.xlu0 %64
    %66 = vset.pattern.permute.xlu0 0
    %67 = vperm.xlu0 %66, %v62
    %v68 = vpop.permute.xlu0 %67
    %vm69 = vcmp.eq.s32.totalorder %v35, %v65
    %vm70 = vcmp.eq.s32.totalorder %v36, %v65
    %vm71 = vcmp.eq.s32.totalorder %v35, %v68
    %vm72 = vcmp.eq.s32.totalorder %v36, %v68
    %v73 = vsel %vm69, 1, 0
    %v74 = vsel %vm70, 1, 0
    %v75 = vsel %vm71, 1, 0
    %v76 = vsel %vm72, 1, 0
    %v77 = vcvt.s32.f32 %v73
    %v78 = vcvt.s32.f32 %v74
    %v79 = vcvt.s32.f32 %v75
    %v80 = vcvt.s32.f32 %v76
    %v81 = vadd.f32 %v53, %v77
    %v82 = vadd.f32 %v54, %v78
    %v83 = vadd.f32 %v55, %v79
    %v84 = vadd.f32 %v56, %v80
    %v85 = vld [vmem:[%s2] sm:$0xff]
    %v86 = vld [vmem:[%s2 + $0x8] sm:$0xff]
    %v87 = vadd.s32 %v85, 64
    %v88 = vadd.s32 %v86, 64
    %89 = vset.pattern.permute.xlu0 0
    %90 = vperm.xlu0 %89, %v87
    %v91 = vpop.permute.xlu0 %90
    %92 = vset.pattern.permute.xlu0 0
    %93 = vperm.xlu0 %92, %v88
    %v94 = vpop.permute.xlu0 %93
    %vm95 = vcmp.eq.s32.totalorder %v35, %v91
    %vm96 = vcmp.eq.s32.totalorder %v36, %v91
    %vm97 = vcmp.eq.s32.totalorder %v35, %v94
    %vm98 = vcmp.eq.s32.totalorder %v36, %v94
    %v99 = vsel %vm95, 1, 0
    %v100 = vsel %vm96, 1, 0
    %v101 = vsel %vm97, 1, 0
    %v102 = vsel %vm98, 1, 0
    %v103 = vcvt.s32.f32 %v99
    %v104 = vcvt.s32.f32 %v100
    %v105 = vcvt.s32.f32 %v101
    %v106 = vcvt.s32.f32 %v102
    %v107 = vadd.f32 %v81, %v103
    %v108 = vadd.f32 %v82, %v104
    %v109 = vadd.f32 %v83, %v105
    %v110 = vadd.f32 %v84, %v106
    %111 = vset.pattern.permute.xlu0 1
    %112 = vperm.xlu0 %111, %v87
    %v113 = vpop.permute.xlu0 %112
    %114 = vset.pattern.permute.xlu0 1
    %115 = vperm.xlu0 %114, %v88
    %v116 = vpop.permute.xlu0 %115
    %vm117 = vcmp.eq.s32.totalorder %v35, %v113
    %vm118 = vcmp.eq.s32.totalorder %v36, %v113
    %vm119 = vcmp.eq.s32.totalorder %v35, %v116
    %vm120 = vcmp.eq.s32.totalorder %v36, %v116
    %v121 = vsel %vm117, 1, 0
    %v122 = vsel %vm118, 1, 0
    %v123 = vsel %vm119, 1, 0
    %v124 = vsel %vm120, 1, 0
    %v125 = vcvt.s32.f32 %v121
    %v126 = vcvt.s32.f32 %v122
    %v127 = vcvt.s32.f32 %v123
    %v128 = vcvt.s32.f32 %v124
    %v129 = vadd.f32 %v107, %v125
    %v130 = vadd.f32 %v108, %v126
    %v131 = vadd.f32 %v109, %v127
    %v132 = vadd.f32 %v110, %v128
    %133 = vset.pattern.permute.xlu0 2
    %134 = vperm.xlu0 %133, %v87
    %v135 = vpop.permute.xlu0 %134
    %136 = vset.pattern.permute.xlu0 2
    %137 = vperm.xlu0 %136, %v88
    %v138 = vpop.permute.xlu0 %137
    %vm139 = vcmp.eq.s32.totalorder %v35, %v135
    %vm140 = vcmp.eq.s32.totalorder %v36, %v135
    %vm141 = vcmp.eq.s32.totalorder %v35, %v138
    %vm142 = vcmp.eq.s32.totalorder %v36, %v138
    %v143 = vsel %vm139, 1, 0
    %v144 = vsel %vm140, 1, 0
    %v145 = vsel %vm141, 1, 0
    %v146 = vsel %vm142, 1, 0
    %v147 = vcvt.s32.f32 %v143
    %v148 = vcvt.s32.f32 %v144
    %v149 = vcvt.s32.f32 %v145
    %v150 = vcvt.s32.f32 %v146
    %v151 = vadd.f32 %v129, %v147
    %v152 = vadd.f32 %v130, %v148
    %v153 = vadd.f32 %v131, %v149
    %v154 = vadd.f32 %v132, %v150
    %155 = vset.pattern.permute.xlu0 3
    %156 = vperm.xlu0 %155, %v87
    %v157 = vpop.permute.xlu0 %156
    %158 = vset.pattern.permute.xlu0 3
    %159 = vperm.xlu0 %158, %v88
    %v160 = vpop.permute.xlu0 %159
    %vm161 = vcmp.eq.s32.totalorder %v35, %v157
    %vm162 = vcmp.eq.s32.totalorder %v36, %v157
    %vm163 = vcmp.eq.s32.totalorder %v35, %v160
    %vm164 = vcmp.eq.s32.totalorder %v36, %v160
    %v165 = vsel %vm161, 1, 0
    %v166 = vsel %vm162, 1, 0
    %v167 = vsel %vm163, 1, 0
    %v168 = vsel %vm164, 1, 0
    %v169 = vcvt.s32.f32 %v165
    %v170 = vcvt.s32.f32 %v166
    %v171 = vcvt.s32.f32 %v167
    %v172 = vcvt.s32.f32 %v168
    %v173 = vadd.f32 %v151, %v169
    %v174 = vadd.f32 %v152, %v170
    %v175 = vadd.f32 %v153, %v171
    %v176 = vadd.f32 %v154, %v172
    %v177 = vpack.c.bf16 %v175, %v173
    %v178 = vpack.c.bf16 %v176, %v174
    %v179 = vld [vmem:[%s4] sm:$0xf]
    %v180 = vld [vmem:[%s4 + $0x4] sm:$0xf]
    %v181 = vld [vmem:[%s4 + $0x8] sm:$0xf]
    %v182 = vld [vmem:[%s4 + $0xc] sm:$0xf]
    %v183 = vld [vmem:[%s4 + $0x10] sm:$0xf]
    %v184 = vld [vmem:[%s4 + $0x14] sm:$0xf]
    %v185 = vld [vmem:[%s4 + $0x18] sm:$0xf]
    %v186 = vld [vmem:[%s4 + $0x1c] sm:$0xf]
    %v187 = vld [vmem:[%s4 + $0x20] sm:$0xf]
    %v188 = vld [vmem:[%s4 + $0x24] sm:$0xf]
    %v189 = vld [vmem:[%s4 + $0x28] sm:$0xf]
    %v190 = vld [vmem:[%s4 + $0x2c] sm:$0xf]
    %v191 = vld [vmem:[%s4 + $0x30] sm:$0xf]
    %v192 = vld [vmem:[%s4 + $0x34] sm:$0xf]
    %v193 = vld [vmem:[%s4 + $0x38] sm:$0xf]
    %v194 = vld [vmem:[%s4 + $0x3c] sm:$0xf]
    %v195 = vld [vmem:[%s4 + $0x40] sm:$0xf]
    %v196 = vld [vmem:[%s4 + $0x44] sm:$0xf]
    %v197 = vld [vmem:[%s4 + $0x48] sm:$0xf]
    %v198 = vld [vmem:[%s4 + $0x4c] sm:$0xf]
    %v219 = vunpack.c.l.b16 %v179
    %v220 = vunpack.c.l.b16 %v180
    %v221 = vunpack.c.l.b16 %v181
    %v222 = vunpack.c.l.b16 %v182
    %v223 = vunpack.c.l.b16 %v183
    %v224 = vunpack.c.l.b16 %v184
    %v225 = vunpack.c.l.b16 %v185
    %v226 = vunpack.c.l.b16 %v186
    %v227 = vunpack.c.l.b16 %v187
    %v228 = vunpack.c.l.b16 %v188
    %v229 = vunpack.c.l.b16 %v189
    %v230 = vunpack.c.l.b16 %v190
    %v231 = vunpack.c.l.b16 %v191
    %v232 = vunpack.c.l.b16 %v192
    %v233 = vunpack.c.l.b16 %v193
    %v234 = vunpack.c.l.b16 %v194
    %v235 = vunpack.c.l.b16 %v195
    %v236 = vunpack.c.l.b16 %v196
    %v237 = vunpack.c.l.b16 %v197
    %v238 = vunpack.c.l.b16 %v198
    %v239 = vpack.c.b16 %v220, %v219
    %v240 = vpack.c.b16 %v222, %v221
    %v241 = vpack.c.b16 %v224, %v223
    %v242 = vpack.c.b16 %v226, %v225
    %v243 = vpack.c.b16 %v228, %v227
    %v244 = vpack.c.b16 %v230, %v229
    %v245 = vpack.c.b16 %v232, %v231
    %v246 = vpack.c.b16 %v234, %v233
    %v247 = vpack.c.b16 %v236, %v235
    %v248 = vpack.c.b16 %v238, %v237
    %vm259 = vcmask 261120
    %v261 = vsel %vm259, %v178, 0
    %263 = vmatprep.subr.bf16.mxu0 0
    %264 = vmatpush1.bf16.msra.mxu0 %v239
    %265 = vmatprep.subr.bf16.mxu0 0
    %266 = vmatpush1.bf16.msra.mxu0 %v240
    %267 = vmatprep.subr.bf16.mxu0 0
    %268 = vmatpush1.bf16.msra.mxu0 %v241
    %269 = vmatprep.subr.bf16.mxu0 0
    %270 = vmatpush1.bf16.msra.mxu0 %v242
    %271 = vmatprep.subr.bf16.mxu0 0
    %272 = vmatpush1.bf16.msra.mxu0 %v243
    %273 = vmatprep.subr.bf16.mxu0 0
    %274 = vmatpush1.bf16.msra.mxu0 %v244
    %275 = vmatprep.subr.bf16.mxu0 0
    %276 = vmatpush1.bf16.msra.mxu0 %v245
    %277 = vmatprep.subr.bf16.mxu0 0
    %278 = vmatpush1.bf16.msra.mxu0 %v246
    %279 = vmatprep.subr.bf16.mxu0 0
    %280 = vmatpush1.bf16.msra.mxu0 %v247
    %281 = vmatprep.subr.bf16.mxu0 0
    %282 = vmatpush1.bf16.msra.mxu0 %v248
    %283 = vmatprep.subr.bf16.mxu0 0
    %284 = vmatpush1.bf16.msra.mxu0 0
    %285 = vmatprep.subr.bf16.mxu0 0
    %286 = vmatpush1.bf16.msra.mxu0 0
    %287 = vmatprep.subr.bf16.mxu0 0
    %288 = vmatpush1.bf16.msra.mxu0 0
    %289 = vmatprep.subr.bf16.mxu0 0
    %290 = vmatpush1.bf16.msra.mxu0 0
    %291 = vmatprep.subr.bf16.mxu0 0
    %292 = vmatpush1.bf16.msra.mxu0 0
    %293 = vmatprep.subr.bf16.mxu0 0
    %294 = vmatpush1.bf16.msra.mxu0 0
    %295 = vmatprep.mubr.bf16.mxu0 %v261
    %296 = vmatmul.mubr.bf16.gmra.mrb[0].mxu0 %v177
    %v297 = vpop.f32.mrb[0].mxu0
    %v298 = vadd.f32 0.0, %v297
    %v299 = vpop.f32.mrb[0].mxu0
    %v300 = vpop.f32.mrb[0].mxu0
    %v301 = vadd.f32 0.0, %v300
    %v302 = vpop.f32.mrb[0].mxu0
    %303 = vdwg.mxu0
    %v304 = vpack.c.bf16 %v301, %v298
    %v305 = vld [vmem:[%s5] sm:$0xf]
    %v306 = vld [vmem:[%s5 + $0x4] sm:$0xf]
    %v307 = vld [vmem:[%s5 + $0x8] sm:$0xf]
    %v308 = vld [vmem:[%s5 + $0xc] sm:$0xf]
    %v309 = vld [vmem:[%s5 + $0x10] sm:$0xf]
    %v310 = vld [vmem:[%s5 + $0x14] sm:$0xf]
    %v311 = vld [vmem:[%s5 + $0x18] sm:$0xf]
    %v312 = vld [vmem:[%s5 + $0x1c] sm:$0xf]
    %v313 = vld [vmem:[%s5 + $0x20] sm:$0xf]
    %v314 = vld [vmem:[%s5 + $0x24] sm:$0xf]
    %v315 = vld [vmem:[%s5 + $0x28] sm:$0xf]
    %v316 = vld [vmem:[%s5 + $0x2c] sm:$0xf]
    %v317 = vld [vmem:[%s5 + $0x30] sm:$0xf]
    %v318 = vld [vmem:[%s5 + $0x34] sm:$0xf]
    %v319 = vld [vmem:[%s5 + $0x38] sm:$0xf]
    %v320 = vld [vmem:[%s5 + $0x3c] sm:$0xf]
    %v337 = vunpack.c.l.b16 %v305
    %v338 = vunpack.c.l.b16 %v306
    %v339 = vunpack.c.l.b16 %v307
    %v340 = vunpack.c.l.b16 %v308
    %v341 = vunpack.c.l.b16 %v309
    %v342 = vunpack.c.l.b16 %v310
    %v343 = vunpack.c.l.b16 %v311
    %v344 = vunpack.c.l.b16 %v312
    %v345 = vunpack.c.l.b16 %v313
    %v346 = vunpack.c.l.b16 %v314
    %v347 = vunpack.c.l.b16 %v315
    %v348 = vunpack.c.l.b16 %v316
    %v349 = vunpack.c.l.b16 %v317
    %v350 = vunpack.c.l.b16 %v318
    %v351 = vunpack.c.l.b16 %v319
    %v352 = vunpack.c.l.b16 %v320
    %v353 = vpack.c.b16 %v338, %v337
    %v354 = vpack.c.b16 %v340, %v339
    %v355 = vpack.c.b16 %v342, %v341
    %v356 = vpack.c.b16 %v344, %v343
    %v357 = vpack.c.b16 %v346, %v345
    %v358 = vpack.c.b16 %v348, %v347
    %v359 = vpack.c.b16 %v350, %v349
    %v360 = vpack.c.b16 %v352, %v351
    %369 = vmatprep.subr.bf16.mxu0 0
    %370 = vmatpush1.bf16.msra.mxu0 %v353
    %371 = vmatprep.subr.bf16.mxu0 0
    %372 = vmatpush1.bf16.msra.mxu0 %v354
    %373 = vmatprep.subr.bf16.mxu0 0
    %374 = vmatpush1.bf16.msra.mxu0 %v355
    %375 = vmatprep.subr.bf16.mxu0 0
    %376 = vmatpush1.bf16.msra.mxu0 %v356
    %377 = vmatprep.subr.bf16.mxu0 0
    %378 = vmatpush1.bf16.msra.mxu0 %v357
    %379 = vmatprep.subr.bf16.mxu0 0
    %380 = vmatpush1.bf16.msra.mxu0 %v358
    %381 = vmatprep.subr.bf16.mxu0 0
    %382 = vmatpush1.bf16.msra.mxu0 %v359
    %383 = vmatprep.subr.bf16.mxu0 0
    %384 = vmatpush1.bf16.msra.mxu0 %v360
    %385 = vmatprep.subr.bf16.mxu0 0
    %386 = vmatpush1.bf16.msra.mxu0 0
    %387 = vmatprep.subr.bf16.mxu0 0
    %388 = vmatpush1.bf16.msra.mxu0 0
    %389 = vmatprep.subr.bf16.mxu0 0
    %390 = vmatpush1.bf16.msra.mxu0 0
    %391 = vmatprep.subr.bf16.mxu0 0
    %392 = vmatpush1.bf16.msra.mxu0 0
    %393 = vmatprep.subr.bf16.mxu0 0
    %394 = vmatpush1.bf16.msra.mxu0 0
    %395 = vmatprep.subr.bf16.mxu0 0
    %396 = vmatpush1.bf16.msra.mxu0 0
    %397 = vmatprep.subr.bf16.mxu0 0
    %398 = vmatpush1.bf16.msra.mxu0 0
    %399 = vmatprep.subr.bf16.mxu0 0
    %400 = vmatpush1.bf16.msra.mxu0 0
    %401 = vmatprep.mubr.bf16.mxu0 0
    %402 = vmatmul.mubr.bf16.gmra.mrb[0].mxu0 %v304
    %v403 = vpop.f32.mrb[0].mxu0
    %v404 = vadd.f32 0.0, %v403
    %v405 = vpop.f32.mrb[0].mxu0
    %v406 = vpop.f32.mrb[0].mxu0
    %v407 = vadd.f32 0.0, %v406
    %v408 = vpop.f32.mrb[0].mxu0
    %409 = vdwg.mxu0
    %v410 = vtanh.pop %v404
    %v411 = vtanh.pop %v407
    %v412 = vld [vmem:[%s6] sm:$0x1]
    %v414 = vlaneseq
    %v415 = vshrl.u32 %v414, 7
    %v416 = vsub.s32 0, %v415
    %v417 = vrot.slane %v412, %v416
    %v419 = vmul.f32 %v410, %v417
    %v420 = vmul.f32 %v411, %v417
    %vm421 = vcmask 523264
    %v422 = vsel %vm421, %v419, 0.0
    %423 = vadd.xlane.f32.xlu0 %v422
    %v424 = vpop.xlane.xlu0 %423
    %v425 = vsel %vm421, %v420, 0.0
    %426 = vadd.xlane.f32.xlu0 %v425
    %v427 = vpop.xlane.xlu0 %426
    %v428 = vld [vmem:[%s3] sm:$0x3]
    %429 = vset.pattern.permute.xlu0 0
    %430 = vperm.xlu0 %429, %v428
    %v431 = vpop.permute.xlu0 %430
    %vm432 = vcmp.lt.s32.totalorder %v35, %v431
    %v435 = vlaneseq
    %v436 = vshrl.u32 %v435, 7
    %v437 = vsub.s32 %v35, %v436
    %v438 = vrot.slane %v424, %v437
    %v439 = vlaneseq
    %v440 = vshrl.u32 %v439, 7
    %v441 = vsub.s32 %v35, %v440
    %v442 = vrot.slane %v427, %v441
    %vm443 = vcmask 1041409
    %v444 = vsel %vm443, %v442, %v438
    %v446 = vsel %vm432, %v444, -1e+30
    %vm447 = vcmask 58368
    %v448 = vsel %vm447, %v446, -inf
    %449 = vmax.xlane.f32.xlu0 %v448
    %v450 = vpop.xlane.xlu0 %449
    %v451 = vsub.f32 %v446, %v450
    %v452 = vmul.f32 %v451, 1.442695
    %v453 = vpow.pop %v452
    %v454 = vsel %vm447, %v453, 0.0
    %455 = vadd.xlane.f32.xlu0 %v454
    %v456 = vpop.xlane.xlu0 %455
    %v457 = vrcp.pop %v456
    %v458 = vmul.f32 %v453, %v457
    %v459 = vlaneseq
    %v460 = vshrl.u32 %v459, 7
    %v461 = vsub.s32 0, %v460
    %v462 = vrot.slane %v458, %v461
    %464 = vbcast.lane.b32.xlu0 %v462, 256
    %v465 = vpop.permute.xlu0 %464
    %v466 = vlaneseq
    %v467 = vshrl.u32 %v466, 7
    %v468 = vsub.s32 1, %v467
    %v469 = vrot.slane %v458, %v468
    %471 = vbcast.lane.b32.xlu0 %v469, 256
    %v472 = vpop.permute.xlu0 %471
    %v473 = vmul.f32 %v465, %v410
    %v474 = vmul.f32 %v472, %v411
    %v475 = vsel %vm421, %v473, 0.0
    %v476 = vrot.slane %v475, 4
    %v477 = vadd.f32 %v475, %v476
    %v478 = vrot.slane %v477, 2
    %v479 = vadd.f32 %v477, %v478
    %v480 = vrot.slane %v479, 1
    %v481 = vadd.f32 %v479, %v480
    %v482 = vsel %vm421, %v474, 0.0
    %v483 = vrot.slane %v482, 4
    %v484 = vadd.f32 %v482, %v483
    %v485 = vrot.slane %v484, 2
    %v486 = vadd.f32 %v484, %v485
    %v487 = vrot.slane %v486, 1
    %v488 = vadd.f32 %v486, %v487
    %v489 = vpack.c.bf16 %v481, %v481
    %v490 = vpack.c.bf16 %v488, %v488
    %v491 = vld [vmem:[%s7] sm:$0xf]
    %v492 = vld [vmem:[%s7 + $0x4] sm:$0xf]
    %v493 = vld [vmem:[%s7 + $0x8] sm:$0xf]
    %v494 = vld [vmem:[%s7 + $0xc] sm:$0xf]
    %v495 = vld [vmem:[%s7 + $0x10] sm:$0xf]
    %v496 = vld [vmem:[%s7 + $0x14] sm:$0xf]
    %v497 = vld [vmem:[%s7 + $0x18] sm:$0xf]
    %v498 = vld [vmem:[%s7 + $0x1c] sm:$0xf]
    %v499 = vld [vmem:[%s8] sm:$0x1]
    %v501 = vlaneseq
    %v502 = vshrl.u32 %v501, 7
    %v503 = vsub.s32 0, %v502
    %v504 = vrot.slane %v499, %v503
    %v508 = vunpack.c.l.b16 %v489
    %v509 = vunpack.c.l.b16 %v490
    %v510 = vsel %vm443, %v509, %v508
    %v511 = vpack.c.b16 %v510, %v510
    %v520 = vunpack.c.l.b16 %v491
    %v521 = vunpack.c.l.b16 %v492
    %v522 = vunpack.c.l.b16 %v493
    %v523 = vunpack.c.l.b16 %v494
    %v524 = vunpack.c.l.b16 %v495
    %v525 = vunpack.c.l.b16 %v496
    %v526 = vunpack.c.l.b16 %v497
    %v527 = vunpack.c.l.b16 %v498
    %v528 = vpack.c.b16 %v521, %v520
    %v529 = vpack.c.b16 %v523, %v522
    %v530 = vpack.c.b16 %v525, %v524
    %v531 = vpack.c.b16 %v527, %v526
    %v537 = vsel %vm421, %v511, 0
    %539 = vmatprep.subr.bf16.mxu0 0
    %540 = vmatpush1.bf16.msra.mxu0 %v528
    %541 = vmatprep.subr.bf16.mxu0 0
    %542 = vmatpush1.bf16.msra.mxu0 %v529
    %543 = vmatprep.subr.bf16.mxu0 0
    %544 = vmatpush1.bf16.msra.mxu0 %v530
    %545 = vmatprep.subr.bf16.mxu0 0
    %546 = vmatpush1.bf16.msra.mxu0 %v531
    %547 = vmatprep.subr.bf16.mxu0 0
    %548 = vmatpush1.bf16.msra.mxu0 0
    %549 = vmatprep.subr.bf16.mxu0 0
    %550 = vmatpush1.bf16.msra.mxu0 0
    %551 = vmatprep.subr.bf16.mxu0 0
    %552 = vmatpush1.bf16.msra.mxu0 0
    %553 = vmatprep.subr.bf16.mxu0 0
    %554 = vmatpush1.bf16.msra.mxu0 0
    %555 = vmatprep.subr.bf16.mxu0 0
    %556 = vmatpush1.bf16.msra.mxu0 0
    %557 = vmatprep.subr.bf16.mxu0 0
    %558 = vmatpush1.bf16.msra.mxu0 0
    %559 = vmatprep.subr.bf16.mxu0 0
    %560 = vmatpush1.bf16.msra.mxu0 0
    %561 = vmatprep.subr.bf16.mxu0 0
    %562 = vmatpush1.bf16.msra.mxu0 0
    %563 = vmatprep.subr.bf16.mxu0 0
    %564 = vmatpush1.bf16.msra.mxu0 0
    %565 = vmatprep.subr.bf16.mxu0 0
    %566 = vmatpush1.bf16.msra.mxu0 0
    %567 = vmatprep.subr.bf16.mxu0 0
    %568 = vmatpush1.bf16.msra.mxu0 0
    %569 = vmatprep.subr.bf16.mxu0 0
    %570 = vmatpush1.bf16.msra.mxu0 0
    %571 = vmatprep.mubr.bf16.mxu0 0
    %572 = vmatmul.mubr.bf16.gmra.mrb[0].mxu0 %v537
    %v573 = vpop.f32.mrb[0].mxu0
    %v574 = vadd.f32 %v504, %v573
    %v575 = vpop.f32.mrb[0].mxu0
    %v576 = vpop.f32.mrb[0].mxu0
    %v577 = vpop.f32.mrb[0].mxu0
    %578 = vdwg.mxu0
    %579 = vst [vmem:[#allocation2] sm:$0x3] %v574
    // Predicated region
    $region38: #{tpu_custom_call.1} parent=1 // pred_check
      _
    $region39: #{tpu_custom_call.1} parent=1 // pred_check_branch
      %581 = sbr.rel (0) target = $region41
    $region40: #{tpu_custom_call.1} parent=1 // pred_region
      %s583 = ssub.s32 32, 32
      %584 = vsyncadd [#allocation3], %s583
      %s586 = sshll.u32 [#allocation2], 4
      %s587 = int_to_ptr.vmem [resolvable:$true] %s586
      %589 = dma.vmem_to_hbm [thread:$0]  %s587, 32, %s9, [#allocation3]
    $region41: #{tpu_custom_call.1} parent=1 // pred_fallthru
      _
    // Predicated region
    $region42: #{tpu_custom_call.1} parent=1 // pred_check
      _
    $region43: #{tpu_custom_call.1} parent=1 // pred_check_branch
      %591 = sbr.rel (0) target = $region45
    $region44: #{tpu_custom_call.1} parent=1 // pred_region
      %592 = dma.done [#allocation3], 32
    $region45: #{tpu_custom_call.1} parent=1 // pred_fallthru
      _
    %593 = vsyncpa [#allocation3], 1

</llo_original>
